<compile_context>
chip_gen: v7x
topology: tpu7x:2x2x1
jax: 0.10.0
libtpu: 0.0.40
codegen_flags: <defaults>
</compile_context>

<pallas_src>
import functools

import jax
import jax.numpy as jnp
from jax.experimental import pallas as pl
from jax.experimental.pallas import tpu as pltpu

# ----------------------------- configuration -------------------------------
B = 4          # batch
D_IN = 16
D_HID = 32
D_OUT = 8
L = 3          # number of posterior samples
EPS = 1e-6

RANK = D_HID * D_IN + D_HID + D_OUT * D_HID + D_OUT      # 808 params


# ----------------------- fused sampling + MLP kernel ------------------------
# Packed param refs have leading axis [0]=mu, [1]=rho, [2+l]=noise sample l.
def viffg_fused_kernel(x_ref, w1t_ref, b1_ref, w2t_ref, b2_ref, o_ref):
    n_samples = o_ref.shape[0]          # static
    x = x_ref[...]                      # (B, D_IN)

    def sigma_of(rho):
        # numerically stable softplus, then clamp (matches torch semantics)
        sp = jnp.maximum(rho, 0.0) + jnp.log1p(jnp.exp(-jnp.abs(rho)))
        return jnp.maximum(sp, EPS)

    # sigma computed ONCE (hoisted out of the per-sample loop)
    mu_w1, mu_b1 = w1t_ref[0], b1_ref[0]
    mu_w2, mu_b2 = w2t_ref[0], b2_ref[0]
    sig_w1, sig_b1 = sigma_of(w1t_ref[1]), sigma_of(b1_ref[1])
    sig_w2, sig_b2 = sigma_of(w2t_ref[1]), sigma_of(b2_ref[1])

    # ---- layer 1: batch all L sample matmuls into one MXU pass -------------
    # W1t_l = mu + noise_l * sigma, concatenated along the output (lane) axis.
    w1_all = jnp.concatenate(
        [mu_w1 + w1t_ref[2 + l] * sig_w1 for l in range(n_samples)], axis=-1
    )                                                       # (D_IN, L*D_HID)
    b1_all = jnp.concatenate(
        [mu_b1 + b1_ref[2 + l] * sig_b1 for l in range(n_samples)], axis=-1
    )                                                       # (1, L*D_HID)
    h_all = jnp.maximum(
        jnp.dot(x, w1_all, preferred_element_type=jnp.float32) + b1_all, 0.0
    )                                                       # (B, L*D_HID)

    # ---- layer 2: tiny per-sample dot, one write per sample slot -----------
    d_hid = mu_w1.shape[-1]
    for l in range(n_samples):                              # static unroll
        w2_l = mu_w2 + w2t_ref[2 + l] * sig_w2              # (D_HID, D_OUT)
        b2_l = mu_b2 + b2_ref[2 + l] * sig_b2               # (1, D_OUT)
        h_l = h_all[:, l * d_hid:(l + 1) * d_hid]           # (B, D_HID)
        y_l = jnp.dot(h_l, w2_l, preferred_element_type=jnp.float32) + b2_l
        o_ref[l] = y_l.astype(o_ref.dtype)


def _full_spec(shape):
    return pl.BlockSpec(shape, lambda i, _n=len(shape): (0,) * _n)


def viffg_fused(x, w1t_pack, b1_pack, w2t_pack, b2_pack, n_samples):
    return pl.pallas_call(
        viffg_fused_kernel,
        out_shape=jax.ShapeDtypeStruct((n_samples, B, D_OUT), jnp.float32),
        grid=(1,),                                   # single step; L unrolled inside
        in_specs=[
            _full_spec(x.shape),
            _full_spec(w1t_pack.shape),
            _full_spec(b1_pack.shape),
            _full_spec(w2t_pack.shape),
            _full_spec(b2_pack.shape),
        ],
        out_specs=_full_spec((n_samples, B, D_OUT)),
        compiler_params=pltpu.CompilerParams(
            dimension_semantics=("arbitrary",)),
    )(x, w1t_pack, b1_pack, w2t_pack, b2_pack)


# ------------------------------- glue (JAX) ---------------------------------
def _split_flat(v):
    """v: (K, RANK) torch-ordered flat params -> transposed MLP layouts.

    Returns W1t (K, D_IN, D_HID), b1 (K, 1, D_HID),
            W2t (K, D_HID, D_OUT), b2 (K, 1, D_OUT).
    """
    k = v.shape[0]
    o = 0
    w1 = v[:, o:o + D_HID * D_IN].reshape(k, D_HID, D_IN); o += D_HID * D_IN
    b1 = v[:, o:o + D_HID].reshape(k, 1, D_HID);           o += D_HID
    w2 = v[:, o:o + D_OUT * D_HID].reshape(k, D_OUT, D_HID); o += D_OUT * D_HID
    b2 = v[:, o:o + D_OUT].reshape(k, 1, D_OUT)
    return jnp.swapaxes(w1, -1, -2), b1, jnp.swapaxes(w2, -1, -2), b2


@functools.partial(jax.jit, static_argnames=("num_samples",))
def vi_ffg_forward(mu, rho, x, noise=None, num_samples=0):
    """Pallas implementation of VIFFGModel.forward.

    num_samples > 0: returns (L, B, D_OUT) stacked sampled forwards.
    num_samples == 0: deterministic forward with w = mu, returns (B, D_OUT).
    """
    if num_samples > 0:
        stacked = jnp.concatenate(
            [mu[None], rho[None], noise[:, :RANK]], axis=0)   # (2+L, RANK)
        packs = _split_flat(stacked)
        return viffg_fused(x, *packs, num_samples)            # (L, B, D_OUT)
    else:
        # TODO(synk): torch path also rebuilds the base module and flips
        # requires_grad; that bookkeeping has no JAX analog and is dropped.
        zeros = jnp.zeros((1, RANK), jnp.float32)             # w = mu + 0*sigma
        stacked = jnp.concatenate([mu[None], rho[None], zeros], axis=0)
        packs = _split_flat(stacked)
        return viffg_fused(x, *packs, 1)[0]                   # (B, D_OUT)


# --------------------------------- main --------------------------------------
if __name__ == "__main__":
    key = jax.random.PRNGKey(0)
    k_mu, k_rho, k_x, k_noise = jax.random.split(key, 4)

    # deterministic parameter init: posterior_mu_initial=(0, 0.1),
    # posterior_rho_initial=(-3, 0.1)
    mu = 0.0 + 0.1 * jax.random.normal(k_mu, (RANK,), jnp.float32)
    rho = -3.0 + 0.1 * jax.random.normal(k_rho, (RANK,), jnp.float32)
    x = jax.random.normal(k_x, (B, D_IN), jnp.float32)
    # torch draws randn inside forward; here the noise is an explicit input.
    noise = jax.random.normal(k_noise, (L, RANK), jnp.float32)

    out = vi_ffg_forward(mu, rho, x, noise=noise, num_samples=L)
    out = jax.block_until_ready(out)
    assert out.shape == (L, B, D_OUT)

    out_det = vi_ffg_forward(mu, rho, x, num_samples=0)
    out_det = jax.block_until_ready(out_det)
    assert out_det.shape == (B, D_OUT)

    # pure-JAX reference for correctness
    def ref_mlp(w_flat):                      # w_flat: (K, RANK)
        K = w_flat.shape[0]
        W1 = w_flat[:, :D_HID * D_IN].reshape(K, D_HID, D_IN)
        b1 = w_flat[:, D_HID * D_IN:D_HID * D_IN + D_HID]
        o2 = D_HID * D_IN + D_HID
        W2 = w_flat[:, o2:o2 + D_OUT * D_HID].reshape(K, D_OUT, D_HID)
        b2 = w_flat[:, o2 + D_OUT * D_HID:o2 + D_OUT * D_HID + D_OUT]
        h = jnp.maximum(jnp.einsum('bi,lhi->lbh', x, W1) + b1[:, None, :], 0.0)
        return jnp.einsum('lbh,loh->lbo', h, W2) + b2[:, None, :]

    sigma = jnp.maximum(jax.nn.softplus(rho), EPS)
    w_ref = mu[None, :] + noise * sigma[None, :]
    y_ref = ref_mlp(w_ref)
    y_det_ref = ref_mlp(mu[None, :])[0]

    assert jnp.allclose(out, y_ref, atol=1e-4, rtol=1e-4), "sampled mismatch"
    assert jnp.allclose(out_det, y_det_ref, atol=1e-4, rtol=1e-4), "det mismatch"
    print("KERNEL_OK")
</pallas_src>

<mosaic_0001>
module attributes {stable_mosaic.version = 11 : i64} {
  func.func @viffg_fused_kernel(%arg0: i32, %arg1: memref<4x16xf32, #tpu.memory_space<vmem>>, %arg2: memref<5x16x32xf32, #tpu.memory_space<vmem>>, %arg3: memref<5x1x32xf32, #tpu.memory_space<vmem>>, %arg4: memref<5x32x8xf32, #tpu.memory_space<vmem>>, %arg5: memref<5x1x8xf32, #tpu.memory_space<vmem>>, %arg6: memref<3x4x8xf32, #tpu.memory_space<vmem>>) attributes {dimension_semantics = [#tpu.dimension_semantics<arbitrary>], iteration_bounds = array<i64: 1>, scalar_prefetch = 0 : i64, scratch_operands = 0 : i64, tpu.core_type = #tpu.core_type<tc>, window_params = [{pipeline_mode = #tpu.pipeline_mode<synchronous>, transform_indices = @transform_0, window_bounds = array<i64: 4, 16>}, {pipeline_mode = #tpu.pipeline_mode<synchronous>, transform_indices = @transform_1, window_bounds = array<i64: 5, 16, 32>}, {pipeline_mode = #tpu.pipeline_mode<synchronous>, transform_indices = @transform_2, window_bounds = array<i64: 5, 1, 32>}, {pipeline_mode = #tpu.pipeline_mode<synchronous>, transform_indices = @transform_3, window_bounds = array<i64: 5, 32, 8>}, {pipeline_mode = #tpu.pipeline_mode<synchronous>, transform_indices = @transform_4, window_bounds = array<i64: 5, 1, 8>}, {pipeline_mode = #tpu.pipeline_mode<synchronous>, transform_indices = @transform_5, window_bounds = array<i64: 3, 4, 8>}]} {
    %c0 = arith.constant 0 : index
    %c0_0 = arith.constant 0 : index
    %0 = vector.load %arg1[%c0, %c0_0] : memref<4x16xf32, #tpu.memory_space<vmem>>, vector<4x16xf32>
    %c0_1 = arith.constant 0 : index
    %c0_2 = arith.constant 0 : index
    %c0_3 = arith.constant 0 : index
    %1 = vector.load %arg2[%c0_1, %c0_2, %c0_3] : memref<5x16x32xf32, #tpu.memory_space<vmem>>, vector<1x16x32xf32>
    %2 = vector.shape_cast %1 : vector<1x16x32xf32> to vector<16x32xf32>
    %c0_4 = arith.constant 0 : index
    %c0_5 = arith.constant 0 : index
    %c0_6 = arith.constant 0 : index
    %3 = vector.load %arg3[%c0_4, %c0_5, %c0_6] : memref<5x1x32xf32, #tpu.memory_space<vmem>>, vector<1x1x32xf32>
    %4 = vector.shape_cast %3 : vector<1x1x32xf32> to vector<1x32xf32>
    %c0_7 = arith.constant 0 : index
    %c0_8 = arith.constant 0 : index
    %c0_9 = arith.constant 0 : index
    %5 = vector.load %arg4[%c0_7, %c0_8, %c0_9] : memref<5x32x8xf32, #tpu.memory_space<vmem>>, vector<1x32x8xf32>
    %6 = vector.shape_cast %5 : vector<1x32x8xf32> to vector<32x8xf32>
    %c0_10 = arith.constant 0 : index
    %c0_11 = arith.constant 0 : index
    %c0_12 = arith.constant 0 : index
    %7 = vector.load %arg5[%c0_10, %c0_11, %c0_12] : memref<5x1x8xf32, #tpu.memory_space<vmem>>, vector<1x1x8xf32>
    %8 = vector.shape_cast %7 : vector<1x1x8xf32> to vector<1x8xf32>
    %c1 = arith.constant 1 : index
    %c0_13 = arith.constant 0 : index
    %c0_14 = arith.constant 0 : index
    %9 = vector.load %arg2[%c1, %c0_13, %c0_14] : memref<5x16x32xf32, #tpu.memory_space<vmem>>, vector<1x16x32xf32>
    %10 = vector.shape_cast %9 : vector<1x16x32xf32> to vector<16x32xf32>
    %cst = arith.constant 0.000000e+00 : f32
    %11 = vector.broadcast %cst : f32 to vector<16x32xf32>
    %12 = arith.maximumf %10, %11 : vector<16x32xf32>
    %13 = math.absf %10 : vector<16x32xf32>
    %cst_15 = arith.constant 0.000000e+00 : f32
    %14 = vector.broadcast %cst_15 : f32 to vector<16x32xf32>
    %15 = arith.subf %14, %13 : vector<16x32xf32>
    %16 = math.exp %15 : vector<16x32xf32>
    %17 = math.log1p %16 : vector<16x32xf32>
    %18 = arith.addf %12, %17 : vector<16x32xf32>
    %cst_16 = arith.constant 9.99999997E-7 : f32
    %19 = vector.broadcast %cst_16 : f32 to vector<16x32xf32>
    %20 = arith.maximumf %18, %19 : vector<16x32xf32>
    %c1_17 = arith.constant 1 : index
    %c0_18 = arith.constant 0 : index
    %c0_19 = arith.constant 0 : index
    %21 = vector.load %arg3[%c1_17, %c0_18, %c0_19] : memref<5x1x32xf32, #tpu.memory_space<vmem>>, vector<1x1x32xf32>
    %22 = vector.shape_cast %21 : vector<1x1x32xf32> to vector<1x32xf32>
    %cst_20 = arith.constant 0.000000e+00 : f32
    %23 = vector.broadcast %cst_20 : f32 to vector<1x32xf32>
    %24 = arith.maximumf %22, %23 : vector<1x32xf32>
    %25 = math.absf %22 : vector<1x32xf32>
    %cst_21 = arith.constant 0.000000e+00 : f32
    %26 = vector.broadcast %cst_21 : f32 to vector<1x32xf32>
    %27 = arith.subf %26, %25 : vector<1x32xf32>
    %28 = math.exp %27 : vector<1x32xf32>
    %29 = math.log1p %28 : vector<1x32xf32>
    %30 = arith.addf %24, %29 : vector<1x32xf32>
    %cst_22 = arith.constant 9.99999997E-7 : f32
    %31 = vector.broadcast %cst_22 : f32 to vector<1x32xf32>
    %32 = arith.maximumf %30, %31 : vector<1x32xf32>
    %c1_23 = arith.constant 1 : index
    %c0_24 = arith.constant 0 : index
    %c0_25 = arith.constant 0 : index
    %33 = vector.load %arg4[%c1_23, %c0_24, %c0_25] : memref<5x32x8xf32, #tpu.memory_space<vmem>>, vector<1x32x8xf32>
    %34 = vector.shape_cast %33 : vector<1x32x8xf32> to vector<32x8xf32>
    %cst_26 = arith.constant 0.000000e+00 : f32
    %35 = vector.broadcast %cst_26 : f32 to vector<32x8xf32>
    %36 = arith.maximumf %34, %35 : vector<32x8xf32>
    %37 = math.absf %34 : vector<32x8xf32>
    %cst_27 = arith.constant 0.000000e+00 : f32
    %38 = vector.broadcast %cst_27 : f32 to vector<32x8xf32>
    %39 = arith.subf %38, %37 : vector<32x8xf32>
    %40 = math.exp %39 : vector<32x8xf32>
    %41 = math.log1p %40 : vector<32x8xf32>
    %42 = arith.addf %36, %41 : vector<32x8xf32>
    %cst_28 = arith.constant 9.99999997E-7 : f32
    %43 = vector.broadcast %cst_28 : f32 to vector<32x8xf32>
    %44 = arith.maximumf %42, %43 : vector<32x8xf32>
    %c1_29 = arith.constant 1 : index
    %c0_30 = arith.constant 0 : index
    %c0_31 = arith.constant 0 : index
    %45 = vector.load %arg5[%c1_29, %c0_30, %c0_31] : memref<5x1x8xf32, #tpu.memory_space<vmem>>, vector<1x1x8xf32>
    %46 = vector.shape_cast %45 : vector<1x1x8xf32> to vector<1x8xf32>
    %cst_32 = arith.constant 0.000000e+00 : f32
    %47 = vector.broadcast %cst_32 : f32 to vector<1x8xf32>
    %48 = arith.maximumf %46, %47 : vector<1x8xf32>
    %49 = math.absf %46 : vector<1x8xf32>
    %cst_33 = arith.constant 0.000000e+00 : f32
    %50 = vector.broadcast %cst_33 : f32 to vector<1x8xf32>
    %51 = arith.subf %50, %49 : vector<1x8xf32>
    %52 = math.exp %51 : vector<1x8xf32>
    %53 = math.log1p %52 : vector<1x8xf32>
    %54 = arith.addf %48, %53 : vector<1x8xf32>
    %cst_34 = arith.constant 9.99999997E-7 : f32
    %55 = vector.broadcast %cst_34 : f32 to vector<1x8xf32>
    %56 = arith.maximumf %54, %55 : vector<1x8xf32>
    %c2 = arith.constant 2 : index
    %c0_35 = arith.constant 0 : index
    %c0_36 = arith.constant 0 : index
    %57 = vector.load %arg2[%c2, %c0_35, %c0_36] : memref<5x16x32xf32, #tpu.memory_space<vmem>>, vector<1x16x32xf32>
    %58 = vector.shape_cast %57 : vector<1x16x32xf32> to vector<16x32xf32>
    %59 = arith.mulf %58, %20 : vector<16x32xf32>
    %60 = arith.addf %2, %59 : vector<16x32xf32>
    %c3 = arith.constant 3 : index
    %c0_37 = arith.constant 0 : index
    %c0_38 = arith.constant 0 : index
    %61 = vector.load %arg2[%c3, %c0_37, %c0_38] : memref<5x16x32xf32, #tpu.memory_space<vmem>>, vector<1x16x32xf32>
    %62 = vector.shape_cast %61 : vector<1x16x32xf32> to vector<16x32xf32>
    %63 = arith.mulf %62, %20 : vector<16x32xf32>
    %64 = arith.addf %2, %63 : vector<16x32xf32>
    %c4 = arith.constant 4 : index
    %c0_39 = arith.constant 0 : index
    %c0_40 = arith.constant 0 : index
    %65 = vector.load %arg2[%c4, %c0_39, %c0_40] : memref<5x16x32xf32, #tpu.memory_space<vmem>>, vector<1x16x32xf32>
    %66 = vector.shape_cast %65 : vector<1x16x32xf32> to vector<16x32xf32>
    %67 = arith.mulf %66, %20 : vector<16x32xf32>
    %68 = arith.addf %2, %67 : vector<16x32xf32>
    %69 = tpu.concatenate %60, %64, %68 in 1 : vector<16x32xf32>, vector<16x32xf32>, vector<16x32xf32> -> vector<16x96xf32>
    %c2_41 = arith.constant 2 : index
    %c0_42 = arith.constant 0 : index
    %c0_43 = arith.constant 0 : index
    %70 = vector.load %arg3[%c2_41, %c0_42, %c0_43] : memref<5x1x32xf32, #tpu.memory_space<vmem>>, vector<1x1x32xf32>
    %71 = vector.shape_cast %70 : vector<1x1x32xf32> to vector<1x32xf32>
    %72 = arith.mulf %71, %32 : vector<1x32xf32>
    %73 = arith.addf %4, %72 : vector<1x32xf32>
    %c3_44 = arith.constant 3 : index
    %c0_45 = arith.constant 0 : index
    %c0_46 = arith.constant 0 : index
    %74 = vector.load %arg3[%c3_44, %c0_45, %c0_46] : memref<5x1x32xf32, #tpu.memory_space<vmem>>, vector<1x1x32xf32>
    %75 = vector.shape_cast %74 : vector<1x1x32xf32> to vector<1x32xf32>
    %76 = arith.mulf %75, %32 : vector<1x32xf32>
    %77 = arith.addf %4, %76 : vector<1x32xf32>
    %c4_47 = arith.constant 4 : index
    %c0_48 = arith.constant 0 : index
    %c0_49 = arith.constant 0 : index
    %78 = vector.load %arg3[%c4_47, %c0_48, %c0_49] : memref<5x1x32xf32, #tpu.memory_space<vmem>>, vector<1x1x32xf32>
    %79 = vector.shape_cast %78 : vector<1x1x32xf32> to vector<1x32xf32>
    %80 = arith.mulf %79, %32 : vector<1x32xf32>
    %81 = arith.addf %4, %80 : vector<1x32xf32>
    %82 = tpu.concatenate %73, %77, %81 in 1 : vector<1x32xf32>, vector<1x32xf32>, vector<1x32xf32> -> vector<1x96xf32>
    %cst_50 = arith.constant dense<0.000000e+00> : vector<4x96xf32>
    %83 = tpu.matmul %0, %69, %cst_50 {dimension_numbers = #tpu.dot_dimension_numbers<[1], [0], [0], [1], [0, 0, 1, 1], [], []>} : vector<4x16xf32>, vector<16x96xf32>, vector<4x96xf32> -> vector<4x96xf32>
    %84 = vector.broadcast %82 : vector<1x96xf32> to vector<4x96xf32>
    %85 = arith.addf %83, %84 : vector<4x96xf32>
    %cst_51 = arith.constant 0.000000e+00 : f32
    %86 = vector.broadcast %cst_51 : f32 to vector<4x96xf32>
    %87 = arith.maximumf %85, %86 : vector<4x96xf32>
    %c2_52 = arith.constant 2 : index
    %c0_53 = arith.constant 0 : index
    %c0_54 = arith.constant 0 : index
    %88 = vector.load %arg4[%c2_52, %c0_53, %c0_54] : memref<5x32x8xf32, #tpu.memory_space<vmem>>, vector<1x32x8xf32>
    %89 = vector.shape_cast %88 : vector<1x32x8xf32> to vector<32x8xf32>
    %90 = arith.mulf %89, %44 : vector<32x8xf32>
    %91 = arith.addf %6, %90 : vector<32x8xf32>
    %c2_55 = arith.constant 2 : index
    %c0_56 = arith.constant 0 : index
    %c0_57 = arith.constant 0 : index
    %92 = vector.load %arg5[%c2_55, %c0_56, %c0_57] : memref<5x1x8xf32, #tpu.memory_space<vmem>>, vector<1x1x8xf32>
    %93 = vector.shape_cast %92 : vector<1x1x8xf32> to vector<1x8xf32>
    %94 = arith.mulf %93, %56 : vector<1x8xf32>
    %95 = arith.addf %8, %94 : vector<1x8xf32>
    %96 = vector.extract_strided_slice %87 {offsets = [0, 0], sizes = [4, 32], strides = [1, 1]} : vector<4x96xf32> to vector<4x32xf32>
    %cst_58 = arith.constant dense<0.000000e+00> : vector<4x8xf32>
    %97 = tpu.matmul %96, %91, %cst_58 {dimension_numbers = #tpu.dot_dimension_numbers<[1], [0], [0], [1], [0, 0, 1, 1], [], []>} : vector<4x32xf32>, vector<32x8xf32>, vector<4x8xf32> -> vector<4x8xf32>
    %98 = vector.broadcast %95 : vector<1x8xf32> to vector<4x8xf32>
    %99 = arith.addf %97, %98 : vector<4x8xf32>
    %c0_59 = arith.constant 0 : index
    %c0_60 = arith.constant 0 : index
    %c0_61 = arith.constant 0 : index
    %100 = vector.load %arg6[%c0_59, %c0_60, %c0_61] : memref<3x4x8xf32, #tpu.memory_space<vmem>>, vector<1x4x8xf32>
    %101 = vector.shape_cast %100 : vector<1x4x8xf32> to vector<4x8xf32>
    %102 = vector.shape_cast %99 : vector<4x8xf32> to vector<1x4x8xf32>
    tpu.vector_store %arg6[%c0_59, %c0_60, %c0_61], %102 {strides = array<i32>} : memref<3x4x8xf32, #tpu.memory_space<vmem>>, vector<1x4x8xf32>,
    %c3_62 = arith.constant 3 : index
    %c0_63 = arith.constant 0 : index
    %c0_64 = arith.constant 0 : index
    %103 = vector.load %arg4[%c3_62, %c0_63, %c0_64] : memref<5x32x8xf32, #tpu.memory_space<vmem>>, vector<1x32x8xf32>
    %104 = vector.shape_cast %103 : vector<1x32x8xf32> to vector<32x8xf32>
    %105 = arith.mulf %104, %44 : vector<32x8xf32>
    %106 = arith.addf %6, %105 : vector<32x8xf32>
    %c3_65 = arith.constant 3 : index
    %c0_66 = arith.constant 0 : index
    %c0_67 = arith.constant 0 : index
    %107 = vector.load %arg5[%c3_65, %c0_66, %c0_67] : memref<5x1x8xf32, #tpu.memory_space<vmem>>, vector<1x1x8xf32>
    %108 = vector.shape_cast %107 : vector<1x1x8xf32> to vector<1x8xf32>
    %109 = arith.mulf %108, %56 : vector<1x8xf32>
    %110 = arith.addf %8, %109 : vector<1x8xf32>
    %111 = vector.extract_strided_slice %87 {offsets = [0, 32], sizes = [4, 32], strides = [1, 1]} : vector<4x96xf32> to vector<4x32xf32>
    %cst_68 = arith.constant dense<0.000000e+00> : vector<4x8xf32>
    %112 = tpu.matmul %111, %106, %cst_68 {dimension_numbers = #tpu.dot_dimension_numbers<[1], [0], [0], [1], [0, 0, 1, 1], [], []>} : vector<4x32xf32>, vector<32x8xf32>, vector<4x8xf32> -> vector<4x8xf32>
    %113 = vector.broadcast %110 : vector<1x8xf32> to vector<4x8xf32>
    %114 = arith.addf %112, %113 : vector<4x8xf32>
    %c1_69 = arith.constant 1 : index
    %c0_70 = arith.constant 0 : index
    %c0_71 = arith.constant 0 : index
    %115 = vector.load %arg6[%c1_69, %c0_70, %c0_71] : memref<3x4x8xf32, #tpu.memory_space<vmem>>, vector<1x4x8xf32>
    %116 = vector.shape_cast %115 : vector<1x4x8xf32> to vector<4x8xf32>
    %117 = vector.shape_cast %114 : vector<4x8xf32> to vector<1x4x8xf32>
    tpu.vector_store %arg6[%c1_69, %c0_70, %c0_71], %117 {strides = array<i32>} : memref<3x4x8xf32, #tpu.memory_space<vmem>>, vector<1x4x8xf32>,
    %c4_72 = arith.constant 4 : index
    %c0_73 = arith.constant 0 : index
    %c0_74 = arith.constant 0 : index
    %118 = vector.load %arg4[%c4_72, %c0_73, %c0_74] : memref<5x32x8xf32, #tpu.memory_space<vmem>>, vector<1x32x8xf32>
    %119 = vector.shape_cast %118 : vector<1x32x8xf32> to vector<32x8xf32>
    %120 = arith.mulf %119, %44 : vector<32x8xf32>
    %121 = arith.addf %6, %120 : vector<32x8xf32>
    %c4_75 = arith.constant 4 : index
    %c0_76 = arith.constant 0 : index
    %c0_77 = arith.constant 0 : index
    %122 = vector.load %arg5[%c4_75, %c0_76, %c0_77] : memref<5x1x8xf32, #tpu.memory_space<vmem>>, vector<1x1x8xf32>
    %123 = vector.shape_cast %122 : vector<1x1x8xf32> to vector<1x8xf32>
    %124 = arith.mulf %123, %56 : vector<1x8xf32>
    %125 = arith.addf %8, %124 : vector<1x8xf32>
    %126 = vector.extract_strided_slice %87 {offsets = [0, 64], sizes = [4, 32], strides = [1, 1]} : vector<4x96xf32> to vector<4x32xf32>
    %cst_78 = arith.constant dense<0.000000e+00> : vector<4x8xf32>
    %127 = tpu.matmul %126, %121, %cst_78 {dimension_numbers = #tpu.dot_dimension_numbers<[1], [0], [0], [1], [0, 0, 1, 1], [], []>} : vector<4x32xf32>, vector<32x8xf32>, vector<4x8xf32> -> vector<4x8xf32>
    %128 = vector.broadcast %125 : vector<1x8xf32> to vector<4x8xf32>
    %129 = arith.addf %127, %128 : vector<4x8xf32>
    %c2_79 = arith.constant 2 : index
    %c0_80 = arith.constant 0 : index
    %c0_81 = arith.constant 0 : index
    %130 = vector.load %arg6[%c2_79, %c0_80, %c0_81] : memref<3x4x8xf32, #tpu.memory_space<vmem>>, vector<1x4x8xf32>
    %131 = vector.shape_cast %130 : vector<1x4x8xf32> to vector<4x8xf32>
    %132 = vector.shape_cast %129 : vector<4x8xf32> to vector<1x4x8xf32>
    tpu.vector_store %arg6[%c2_79, %c0_80, %c0_81], %132 {strides = array<i32>} : memref<3x4x8xf32, #tpu.memory_space<vmem>>, vector<1x4x8xf32>,
    return
  }
  func.func @transform_0(%arg0: i32) -> (i32, i32) {
    %c0_i32 = arith.constant 0 : i32
    %c0_i32_0 = arith.constant 0 : i32
    %c0_i32_1 = arith.constant 0 : i32
    return %c0_i32, %c0_i32_0 : i32, i32
  }
  func.func @transform_1(%arg0: i32) -> (i32, i32, i32) {
    %c0_i32 = arith.constant 0 : i32
    %c0_i32_0 = arith.constant 0 : i32
    %c0_i32_1 = arith.constant 0 : i32
    %c0_i32_2 = arith.constant 0 : i32
    return %c0_i32, %c0_i32_0, %c0_i32_1 : i32, i32, i32
  }
  func.func @transform_2(%arg0: i32) -> (i32, i32, i32) {
    %c0_i32 = arith.constant 0 : i32
    %c0_i32_0 = arith.constant 0 : i32
    %c0_i32_1 = arith.constant 0 : i32
    %c0_i32_2 = arith.constant 0 : i32
    return %c0_i32, %c0_i32_0, %c0_i32_1 : i32, i32, i32
  }
  func.func @transform_3(%arg0: i32) -> (i32, i32, i32) {
    %c0_i32 = arith.constant 0 : i32
    %c0_i32_0 = arith.constant 0 : i32
    %c0_i32_1 = arith.constant 0 : i32
    %c0_i32_2 = arith.constant 0 : i32
    return %c0_i32, %c0_i32_0, %c0_i32_1 : i32, i32, i32
  }
  func.func @transform_4(%arg0: i32) -> (i32, i32, i32) {
    %c0_i32 = arith.constant 0 : i32
    %c0_i32_0 = arith.constant 0 : i32
    %c0_i32_1 = arith.constant 0 : i32
    %c0_i32_2 = arith.constant 0 : i32
    return %c0_i32, %c0_i32_0, %c0_i32_1 : i32, i32, i32
  }
  func.func @transform_5(%arg0: i32) -> (i32, i32, i32) {
    %c0_i32 = arith.constant 0 : i32
    %c0_i32_0 = arith.constant 0 : i32
    %c0_i32_1 = arith.constant 0 : i32
    %c0_i32_2 = arith.constant 0 : i32
    return %c0_i32, %c0_i32_0, %c0_i32_1 : i32, i32, i32
  }
}

</mosaic_0001>

<llo_original>
// kernel: vi_ffg_forward.1
$region0: #{vi_ffg_forward.1}
  #allocation0 [shape = 'u32[]', space=smem, size = 0x4, offset = 0x4, fixed_abs, tag = 'smem constant byte address 0x4 - core index']
  #allocation1 [shape = 'u32[144,128]{1,0:T(1,128)}', space=vmem, size = 0x12000, scoped, tag = 'internal scratch']
  %s0 = inlined_call_operand.vmem [shape: f32[4,16], index: 0, kind: input, shape index: {}]
  %s1 = inlined_call_operand.vmem [shape: f32[5,16,32], index: 1, kind: input, shape index: {}]
  %s2 = inlined_call_operand.vmem [shape: f32[5,1,32], index: 2, kind: input, shape index: {}]
  %s3 = inlined_call_operand.vmem [shape: f32[5,32,8], index: 3, kind: input, shape index: {}]
  %s4 = inlined_call_operand.vmem [shape: f32[5,1,8], index: 4, kind: input, shape index: {}]
  %s5 = inlined_call_operand.hbm [shape: f32[3,4,8], index: 5, kind: output, shape index: {}]
  %s6 = sld [smem:[#allocation0]]
  $region30: #{vi_ffg_forward.1} parent=0
    _
  %s8 = ssub.s32 1, %s6
  %s9 = scalar_select 0, %s8, %s6
  $region1: #{vi_ffg_forward.1} parent=0
    #allocation2 [shape = 'u8[6144]{0}', space=vmem, size = 0x1800, scoped, tag = 'output window, operand 0, single buffered']
    #allocation3 [shape = 's32[1]{0}', space=sflag, size = 0x4, scoped, tag = 'scoped memory for vi_ffg_forward.1']
    %10 = vsyncpa [#allocation3], 0
    // Predicated region
    $region2: #{vi_ffg_forward.1} parent=1 // pred_check
      _
    $region3: #{vi_ffg_forward.1} parent=1 // pred_check_branch
      %12 = sbr.rel (0) target = $region5
    $region4: #{vi_ffg_forward.1} parent=1 // pred_region
      _
    $region5: #{vi_ffg_forward.1} parent=1 // pred_fallthru
      _
    // Predicated region
    $region6: #{vi_ffg_forward.1} parent=1 // pred_check
      _
    $region7: #{vi_ffg_forward.1} parent=1 // pred_check_branch
      %14 = sbr.rel (0) target = $region9
    $region8: #{vi_ffg_forward.1} parent=1 // pred_region
      _
    $region9: #{vi_ffg_forward.1} parent=1 // pred_fallthru
      _
    // Predicated region
    $region10: #{vi_ffg_forward.1} parent=1 // pred_check
      _
    $region11: #{vi_ffg_forward.1} parent=1 // pred_check_branch
      %16 = sbr.rel (0) target = $region13
    $region12: #{vi_ffg_forward.1} parent=1 // pred_region
      _
    $region13: #{vi_ffg_forward.1} parent=1 // pred_fallthru
      _
    // Predicated region
    $region14: #{vi_ffg_forward.1} parent=1 // pred_check
      _
    $region15: #{vi_ffg_forward.1} parent=1 // pred_check_branch
      %18 = sbr.rel (0) target = $region17
    $region16: #{vi_ffg_forward.1} parent=1 // pred_region
      _
    $region17: #{vi_ffg_forward.1} parent=1 // pred_fallthru
      _
    // Predicated region
    $region18: #{vi_ffg_forward.1} parent=1 // pred_check
      _
    $region19: #{vi_ffg_forward.1} parent=1 // pred_check_branch
      %20 = sbr.rel (0) target = $region21
    $region20: #{vi_ffg_forward.1} parent=1 // pred_region
      _
    $region21: #{vi_ffg_forward.1} parent=1 // pred_fallthru
      _
    %v21 = vld [vmem:[%s0] sm:$0xf]
    %v22 = vld [vmem:[%s1] sm:$0xff]
    %v23 = vld [vmem:[%s1 + $0x8] sm:$0xff]
    %v24 = vld [vmem:[%s2] sm:$0x1]
    %v25 = vld [vmem:[%s3] sm:$0xff]
    %v26 = vld [vmem:[%s3 + $0x8] sm:$0xff]
    %v27 = vld [vmem:[%s3 + $0x10] sm:$0xff]
    %v28 = vld [vmem:[%s3 + $0x18] sm:$0xff]
    %v29 = vld [vmem:[%s4] sm:$0x1]
    %s30 = scalar_lea.vmem %s1, 16
    %v31 = vld [vmem:[%s30] sm:$0xff]
    %v32 = vld [vmem:[%s30 + $0x8] sm:$0xff]
    %v33 = vmax.f32 %v31, 0.0
    %v34 = vmax.f32 %v32, 0.0
    %v35 = vand.u32 2147483647, %v31
    %v36 = vand.u32 2147483647, %v32
    %v37 = vsub.f32 0.0, %v35
    %v38 = vsub.f32 0.0, %v36
    %v39 = vmul.f32 %v37, 1.442695
    %v40 = vpow.pop %v39
    %v41 = vmul.f32 %v38, 1.442695
    %v42 = vpow.pop %v41
    %v43 = vadd.f32 %v40, 1.0
    %v44 = vlog2.pop %v43
    %v45 = vmul.f32 %v44, 0.6931472
    %v46 = vmul.f32 -0.5, %v40
    %v47 = vadd.f32 %v46, 1.0
    %v48 = vmul.f32 %v47, %v40
    %v49 = vand.u32 2147483647, %v40
    %vm50 = vcmp.lt.f32.partialorder %v49, 0.0004427343
    %v51 = vsel %vm50, %v48, %v45
    %v52 = vadd.f32 %v42, 1.0
    %v53 = vlog2.pop %v52
    %v54 = vmul.f32 %v53, 0.6931472
    %v55 = vmul.f32 -0.5, %v42
    %v56 = vadd.f32 %v55, 1.0
    %v57 = vmul.f32 %v56, %v42
    %v58 = vand.u32 2147483647, %v42
    %vm59 = vcmp.lt.f32.partialorder %v58, 0.0004427343
    %v60 = vsel %vm59, %v57, %v54
    %v61 = vadd.f32 %v33, %v51
    %v62 = vadd.f32 %v34, %v60
    %v63 = vmax.f32 %v61, 1e-06
    %v64 = vmax.f32 %v62, 1e-06
    %s65 = scalar_lea.vmem %s2, 1
    %v66 = vld [vmem:[%s65] sm:$0x1]
    %v67 = vmax.f32 %v66, 0.0
    %v68 = vand.u32 2147483647, %v66
    %v69 = vsub.f32 0.0, %v68
    %v70 = vmul.f32 %v69, 1.442695
    %v71 = vpow.pop %v70
    %v72 = vadd.f32 %v71, 1.0
    %v73 = vlog2.pop %v72
    %v74 = vmul.f32 %v73, 0.6931472
    %v75 = vmul.f32 -0.5, %v71
    %v76 = vadd.f32 %v75, 1.0
    %v77 = vmul.f32 %v76, %v71
    %v78 = vand.u32 2147483647, %v71
    %vm79 = vcmp.lt.f32.partialorder %v78, 0.0004427343
    %v80 = vsel %vm79, %v77, %v74
    %v81 = vadd.f32 %v67, %v80
    %v82 = vmax.f32 %v81, 1e-06
    %s83 = scalar_lea.vmem %s3, 32
    %v84 = vld [vmem:[%s83] sm:$0xff]
    %v85 = vld [vmem:[%s83 + $0x8] sm:$0xff]
    %v86 = vld [vmem:[%s83 + $0x10] sm:$0xff]
    %v87 = vld [vmem:[%s83 + $0x18] sm:$0xff]
    %v88 = vmax.f32 %v84, 0.0
    %v89 = vmax.f32 %v85, 0.0
    %v90 = vmax.f32 %v86, 0.0
    %v91 = vmax.f32 %v87, 0.0
    %v92 = vand.u32 2147483647, %v84
    %v93 = vand.u32 2147483647, %v85
    %v94 = vand.u32 2147483647, %v86
    %v95 = vand.u32 2147483647, %v87
    %v96 = vsub.f32 0.0, %v92
    %v97 = vsub.f32 0.0, %v93
    %v98 = vsub.f32 0.0, %v94
    %v99 = vsub.f32 0.0, %v95
    %v100 = vmul.f32 %v96, 1.442695
    %v101 = vpow.pop %v100
    %v102 = vmul.f32 %v97, 1.442695
    %v103 = vpow.pop %v102
    %v104 = vmul.f32 %v98, 1.442695
    %v105 = vpow.pop %v104
    %v106 = vmul.f32 %v99, 1.442695
    %v107 = vpow.pop %v106
    %v108 = vadd.f32 %v101, 1.0
    %v109 = vlog2.pop %v108
    %v110 = vmul.f32 %v109, 0.6931472
    %v111 = vmul.f32 -0.5, %v101
    %v112 = vadd.f32 %v111, 1.0
    %v113 = vmul.f32 %v112, %v101
    %v114 = vand.u32 2147483647, %v101
    %vm115 = vcmp.lt.f32.partialorder %v114, 0.0004427343
    %v116 = vsel %vm115, %v113, %v110
    %v117 = vadd.f32 %v103, 1.0
    %v118 = vlog2.pop %v117
    %v119 = vmul.f32 %v118, 0.6931472
    %v120 = vmul.f32 -0.5, %v103
    %v121 = vadd.f32 %v120, 1.0
    %v122 = vmul.f32 %v121, %v103
    %v123 = vand.u32 2147483647, %v103
    %vm124 = vcmp.lt.f32.partialorder %v123, 0.0004427343
    %v125 = vsel %vm124, %v122, %v119
    %v126 = vadd.f32 %v105, 1.0
    %v127 = vlog2.pop %v126
    %v128 = vmul.f32 %v127, 0.6931472
    %v129 = vmul.f32 -0.5, %v105
    %v130 = vadd.f32 %v129, 1.0
    %v131 = vmul.f32 %v130, %v105
    %v132 = vand.u32 2147483647, %v105
    %vm133 = vcmp.lt.f32.partialorder %v132, 0.0004427343
    %v134 = vsel %vm133, %v131, %v128
    %v135 = vadd.f32 %v107, 1.0
    %v136 = vlog2.pop %v135
    %v137 = vmul.f32 %v136, 0.6931472
    %v138 = vmul.f32 -0.5, %v107
    %v139 = vadd.f32 %v138, 1.0
    %v140 = vmul.f32 %v139, %v107
    %v141 = vand.u32 2147483647, %v107
    %vm142 = vcmp.lt.f32.partialorder %v141, 0.0004427343
    %v143 = vsel %vm142, %v140, %v137
    %v144 = vadd.f32 %v88, %v116
    %v145 = vadd.f32 %v89, %v125
    %v146 = vadd.f32 %v90, %v134
    %v147 = vadd.f32 %v91, %v143
    %v148 = vmax.f32 %v144, 1e-06
    %v149 = vmax.f32 %v145, 1e-06
    %v150 = vmax.f32 %v146, 1e-06
    %v151 = vmax.f32 %v147, 1e-06
    %s152 = scalar_lea.vmem %s4, 1
    %v153 = vld [vmem:[%s152] sm:$0x1]
    %v154 = vmax.f32 %v153, 0.0
    %v155 = vand.u32 2147483647, %v153
    %v156 = vsub.f32 0.0, %v155
    %v157 = vmul.f32 %v156, 1.442695
    %v158 = vpow.pop %v157
    %v159 = vadd.f32 %v158, 1.0
    %v160 = vlog2.pop %v159
    %v161 = vmul.f32 %v160, 0.6931472
    %v162 = vmul.f32 -0.5, %v158
    %v163 = vadd.f32 %v162, 1.0
    %v164 = vmul.f32 %v163, %v158
    %v165 = vand.u32 2147483647, %v158
    %vm166 = vcmp.lt.f32.partialorder %v165, 0.0004427343
    %v167 = vsel %vm166, %v164, %v161
    %v168 = vadd.f32 %v154, %v167
    %v169 = vmax.f32 %v168, 1e-06
    %s170 = scalar_lea.vmem %s1, 32
    %v171 = vld [vmem:[%s170] sm:$0xff]
    %v172 = vld [vmem:[%s170 + $0x8] sm:$0xff]
    %v173 = vmul.f32 %v171, %v63
    %v174 = vmul.f32 %v172, %v64
    %v175 = vadd.f32 %v22, %v173
    %v176 = vadd.f32 %v23, %v174
    %s177 = scalar_lea.vmem %s1, 48
    %v178 = vld [vmem:[%s177] sm:$0xff]
    %v179 = vld [vmem:[%s177 + $0x8] sm:$0xff]
    %v180 = vmul.f32 %v178, %v63
    %v181 = vmul.f32 %v179, %v64
    %v182 = vadd.f32 %v22, %v180
    %v183 = vadd.f32 %v23, %v181
    %s184 = scalar_lea.vmem %s1, 64
    %v185 = vld [vmem:[%s184] sm:$0xff]
    %v186 = vld [vmem:[%s184 + $0x8] sm:$0xff]
    %v187 = vmul.f32 %v185, %v63
    %v188 = vmul.f32 %v186, %v64
    %v189 = vadd.f32 %v22, %v187
    %v190 = vadd.f32 %v23, %v188
    %193 = vrot.lane.b32.xlu0 %v182, 32
    %v194 = vpop.permute.xlu0 %193
    %195 = vrot.lane.b32.xlu0 %v183, 32
    %v196 = vpop.permute.xlu0 %195
    %201 = vrot.lane.b32.xlu0 %v189, 64
    %v202 = vpop.permute.xlu0 %201
    %203 = vrot.lane.b32.xlu0 %v190, 64
    %v204 = vpop.permute.xlu0 %203
    %vm207 = vcmask 261120
    %v208 = vsel %vm207, %v175, %v194
    %v209 = vsel %vm207, %v176, %v196
    %vm210 = vcmask 523264
    %v211 = vsel %vm210, %v208, %v202
    %v212 = vsel %vm210, %v209, %v204
    %s213 = scalar_lea.vmem %s2, 2
    %v214 = vld [vmem:[%s213] sm:$0x1]
    %v215 = vmul.f32 %v214, %v82
    %v216 = vadd.f32 %v24, %v215
    %s217 = scalar_lea.vmem %s2, 3
    %v218 = vld [vmem:[%s217] sm:$0x1]
    %v219 = vmul.f32 %v218, %v82
    %v220 = vadd.f32 %v24, %v219
    %s221 = scalar_lea.vmem %s2, 4
    %v222 = vld [vmem:[%s221] sm:$0x1]
    %v223 = vmul.f32 %v222, %v82
    %v224 = vadd.f32 %v24, %v223
    %v226 = vlaneseq
    %v227 = vshrl.u32 %v226, 7
    %v228 = vsub.s32 0, %v227
    %v229 = vrot.slane %v220, %v228
    %230 = vrot.lane.b32.xlu0 %v229, 32
    %v231 = vpop.permute.xlu0 %230
    %v234 = vlaneseq
    %v235 = vshrl.u32 %v234, 7
    %v236 = vsub.s32 0, %v235
    %v237 = vrot.slane %v224, %v236
    %238 = vrot.lane.b32.xlu0 %v237, 64
    %v239 = vpop.permute.xlu0 %238
    %v241 = vsel %vm207, %v216, %v231
    %v242 = vsel %vm210, %v241, %v239
    %v243 = vlaneseq
    %v244 = vshrl.u32 %v243, 7
    %v245 = vsub.s32 0, %v244
    %v246 = vrot.slane %v242, %v245
    %vm247 = vcmask 130048
    %v249 = vsel %vm247, %v21, 0
    %251 = vmatprep.subr.mxu0 0.0
    %252 = vmatpush1.msra.mxu0 %v211
    %253 = vmatprep.subr.mxu0 0.0
    %254 = vmatpush1.msra.mxu0 %v212
    %255 = vmatprep.subr.mxu0 0.0
    %256 = vmatpush1.msra.mxu0 0.0
    %257 = vmatprep.subr.mxu0 0.0
    %258 = vmatpush1.msra.mxu0 0.0
    %259 = vmatprep.subr.mxu0 0.0
    %260 = vmatpush1.msra.mxu0 0.0
    %261 = vmatprep.subr.mxu0 0.0
    %262 = vmatpush1.msra.mxu0 0.0
    %263 = vmatprep.subr.mxu0 0.0
    %264 = vmatpush1.msra.mxu0 0.0
    %265 = vmatprep.subr.mxu0 0.0
    %266 = vmatpush1.msra.mxu0 0.0
    %267 = vmatprep.subr.mxu0 0.0
    %268 = vmatpush1.msra.mxu0 0.0
    %269 = vmatprep.subr.mxu0 0.0
    %270 = vmatpush1.msra.mxu0 0.0
    %271 = vmatprep.subr.mxu0 0.0
    %272 = vmatpush1.msra.mxu0 0.0
    %273 = vmatprep.subr.mxu0 0.0
    %274 = vmatpush1.msra.mxu0 0.0
    %275 = vmatprep.subr.mxu0 0.0
    %276 = vmatpush1.msra.mxu0 0.0
    %277 = vmatprep.subr.mxu0 0.0
    %278 = vmatpush1.msra.mxu0 0.0
    %279 = vmatprep.subr.mxu0 0.0
    %280 = vmatpush1.msra.mxu0 0.0
    %281 = vmatprep.subr.mxu0 0.0
    %282 = vmatpush1.msra.mxu0 0.0
    %283 = vmatprep.subr.mxu0 0.0
    %284 = vmatpush1.msra.mxu0 0.0
    %285 = vmatprep.subr.mxu0 0.0
    %286 = vmatpush1.msra.mxu0 0.0
    %287 = vmatprep.subr.mxu0 0.0
    %288 = vmatpush1.msra.mxu0 0.0
    %289 = vmatprep.subr.mxu0 0.0
    %290 = vmatpush1.msra.mxu0 0.0
    %291 = vmatprep.subr.mxu0 0.0
    %292 = vmatpush1.msra.mxu0 0.0
    %293 = vmatprep.subr.mxu0 0.0
    %294 = vmatpush1.msra.mxu0 0.0
    %295 = vmatprep.subr.mxu0 0.0
    %296 = vmatpush1.msra.mxu0 0.0
    %297 = vmatprep.subr.mxu0 0.0
    %298 = vmatpush1.msra.mxu0 0.0
    %299 = vmatprep.subr.mxu0 0.0
    %300 = vmatpush1.msra.mxu0 0.0
    %301 = vmatprep.subr.mxu0 0.0
    %302 = vmatpush1.msra.mxu0 0.0
    %303 = vmatprep.subr.mxu0 0.0
    %304 = vmatpush1.msra.mxu0 0.0
    %305 = vmatprep.subr.mxu0 0.0
    %306 = vmatpush1.msra.mxu0 0.0
    %307 = vmatprep.subr.mxu0 0.0
    %308 = vmatpush1.msra.mxu0 0.0
    %309 = vmatprep.subr.mxu0 0.0
    %310 = vmatpush1.msra.mxu0 0.0
    %311 = vmatprep.subr.mxu0 0.0
    %312 = vmatpush1.msra.mxu0 0.0
    %313 = vmatprep.subr.mxu0 0.0
    %314 = vmatpush1.msra.mxu0 0.0
    %315 = vmatprep.mubr.f32.mxu0 0.0
    %316 = vmatmul.mubr.f32.gmra.mrb[0].mxu0 %v249
    %v317 = vpop.f32.mrb[0].mxu0
    %v318 = vadd.f32 %v246, %v317
    %v319 = vpop.f32.mrb[0].mxu0
    %320 = vdwg.mxu0
    %v321 = vmax.f32 %v318, 0.0
    %s322 = scalar_lea.vmem %s3, 64
    %v323 = vld [vmem:[%s322] sm:$0xff]
    %v324 = vld [vmem:[%s322 + $0x8] sm:$0xff]
    %v325 = vld [vmem:[%s322 + $0x10] sm:$0xff]
    %v326 = vld [vmem:[%s322 + $0x18] sm:$0xff]
    %v327 = vmul.f32 %v323, %v148
    %v328 = vmul.f32 %v324, %v149
    %v329 = vmul.f32 %v325, %v150
    %v330 = vmul.f32 %v326, %v151
    %v331 = vadd.f32 %v25, %v327
    %v332 = vadd.f32 %v26, %v328
    %v333 = vadd.f32 %v27, %v329
    %v334 = vadd.f32 %v28, %v330
    %s335 = scalar_lea.vmem %s4, 2
    %v336 = vld [vmem:[%s335] sm:$0x1]
    %v337 = vmul.f32 %v336, %v169
    %v338 = vadd.f32 %v29, %v337
    %v340 = vlaneseq
    %v341 = vshrl.u32 %v340, 7
    %v342 = vsub.s32 0, %v341
    %v343 = vrot.slane %v338, %v342
    %v346 = vsel %vm207, %v321, 0
    %348 = vmatprep.subr.mxu0 0.0
    %349 = vmatpush1.msra.mxu0 %v331
    %350 = vmatprep.subr.mxu0 0.0
    %351 = vmatpush1.msra.mxu0 %v332
    %352 = vmatprep.subr.mxu0 0.0
    %353 = vmatpush1.msra.mxu0 %v333
    %354 = vmatprep.subr.mxu0 0.0
    %355 = vmatpush1.msra.mxu0 %v334
    %356 = vmatprep.subr.mxu0 0.0
    %357 = vmatpush1.msra.mxu0 0.0
    %358 = vmatprep.subr.mxu0 0.0
    %359 = vmatpush1.msra.mxu0 0.0
    %360 = vmatprep.subr.mxu0 0.0
    %361 = vmatpush1.msra.mxu0 0.0
    %362 = vmatprep.subr.mxu0 0.0
    %363 = vmatpush1.msra.mxu0 0.0
    %364 = vmatprep.subr.mxu0 0.0
    %365 = vmatpush1.msra.mxu0 0.0
    %366 = vmatprep.subr.mxu0 0.0
    %367 = vmatpush1.msra.mxu0 0.0
    %368 = vmatprep.subr.mxu0 0.0
    %369 = vmatpush1.msra.mxu0 0.0
    %370 = vmatprep.subr.mxu0 0.0
    %371 = vmatpush1.msra.mxu0 0.0
    %372 = vmatprep.subr.mxu0 0.0
    %373 = vmatpush1.msra.mxu0 0.0
    %374 = vmatprep.subr.mxu0 0.0
    %375 = vmatpush1.msra.mxu0 0.0
    %376 = vmatprep.subr.mxu0 0.0
    %377 = vmatpush1.msra.mxu0 0.0
    %378 = vmatprep.subr.mxu0 0.0
    %379 = vmatpush1.msra.mxu0 0.0
    %380 = vmatprep.subr.mxu0 0.0
    %381 = vmatpush1.msra.mxu0 0.0
    %382 = vmatprep.subr.mxu0 0.0
    %383 = vmatpush1.msra.mxu0 0.0
    %384 = vmatprep.subr.mxu0 0.0
    %385 = vmatpush1.msra.mxu0 0.0
    %386 = vmatprep.subr.mxu0 0.0
    %387 = vmatpush1.msra.mxu0 0.0
    %388 = vmatprep.subr.mxu0 0.0
    %389 = vmatpush1.msra.mxu0 0.0
    %390 = vmatprep.subr.mxu0 0.0
    %391 = vmatpush1.msra.mxu0 0.0
    %392 = vmatprep.subr.mxu0 0.0
    %393 = vmatpush1.msra.mxu0 0.0
    %394 = vmatprep.subr.mxu0 0.0
    %395 = vmatpush1.msra.mxu0 0.0
    %396 = vmatprep.subr.mxu0 0.0
    %397 = vmatpush1.msra.mxu0 0.0
    %398 = vmatprep.subr.mxu0 0.0
    %399 = vmatpush1.msra.mxu0 0.0
    %400 = vmatprep.subr.mxu0 0.0
    %401 = vmatpush1.msra.mxu0 0.0
    %402 = vmatprep.subr.mxu0 0.0
    %403 = vmatpush1.msra.mxu0 0.0
    %404 = vmatprep.subr.mxu0 0.0
    %405 = vmatpush1.msra.mxu0 0.0
    %406 = vmatprep.subr.mxu0 0.0
    %407 = vmatpush1.msra.mxu0 0.0
    %408 = vmatprep.subr.mxu0 0.0
    %409 = vmatpush1.msra.mxu0 0.0
    %410 = vmatprep.subr.mxu0 0.0
    %411 = vmatpush1.msra.mxu0 0.0
    %412 = vmatprep.mubr.f32.mxu0 0.0
    %413 = vmatmul.mubr.f32.gmra.mrb[0].mxu0 %v346
    %v414 = vpop.f32.mrb[0].mxu0
    %v415 = vadd.f32 %v343, %v414
    %v416 = vpop.f32.mrb[0].mxu0
    %417 = vdwg.mxu0
    %vm418 = vcmask 60416
    %419 = vst.msk [vmem:[#allocation2] sm:$0xf] %vm418, %v415
    %s420 = scalar_lea.vmem %s3, 96
    %v421 = vld [vmem:[%s420] sm:$0xff]
    %v422 = vld [vmem:[%s420 + $0x8] sm:$0xff]
    %v423 = vld [vmem:[%s420 + $0x10] sm:$0xff]
    %v424 = vld [vmem:[%s420 + $0x18] sm:$0xff]
    %v425 = vmul.f32 %v421, %v148
    %v426 = vmul.f32 %v422, %v149
    %v427 = vmul.f32 %v423, %v150
    %v428 = vmul.f32 %v424, %v151
    %v429 = vadd.f32 %v25, %v425
    %v430 = vadd.f32 %v26, %v426
    %v431 = vadd.f32 %v27, %v427
    %v432 = vadd.f32 %v28, %v428
    %s433 = scalar_lea.vmem %s4, 3
    %v434 = vld [vmem:[%s433] sm:$0x1]
    %v435 = vmul.f32 %v434, %v169
    %v436 = vadd.f32 %v29, %v435
    %v438 = vlaneseq
    %v439 = vshrl.u32 %v438, 7
    %v440 = vsub.s32 0, %v439
    %v441 = vrot.slane %v436, %v440
    %443 = vrot.lane.b32.xlu0 %v321, 96
    %v444 = vpop.permute.xlu0 %443
    %v445 = vsel %vm207, %v444, 0
    %447 = vmatprep.subr.mxu0 0.0
    %448 = vmatpush1.msra.mxu0 %v429
    %449 = vmatprep.subr.mxu0 0.0
    %450 = vmatpush1.msra.mxu0 %v430
    %451 = vmatprep.subr.mxu0 0.0
    %452 = vmatpush1.msra.mxu0 %v431
    %453 = vmatprep.subr.mxu0 0.0
    %454 = vmatpush1.msra.mxu0 %v432
    %455 = vmatprep.subr.mxu0 0.0
    %456 = vmatpush1.msra.mxu0 0.0
    %457 = vmatprep.subr.mxu0 0.0
    %458 = vmatpush1.msra.mxu0 0.0
    %459 = vmatprep.subr.mxu0 0.0
    %460 = vmatpush1.msra.mxu0 0.0
    %461 = vmatprep.subr.mxu0 0.0
    %462 = vmatpush1.msra.mxu0 0.0
    %463 = vmatprep.subr.mxu0 0.0
    %464 = vmatpush1.msra.mxu0 0.0
    %465 = vmatprep.subr.mxu0 0.0
    %466 = vmatpush1.msra.mxu0 0.0
    %467 = vmatprep.subr.mxu0 0.0
    %468 = vmatpush1.msra.mxu0 0.0
    %469 = vmatprep.subr.mxu0 0.0
    %470 = vmatpush1.msra.mxu0 0.0
    %471 = vmatprep.subr.mxu0 0.0
    %472 = vmatpush1.msra.mxu0 0.0
    %473 = vmatprep.subr.mxu0 0.0
    %474 = vmatpush1.msra.mxu0 0.0
    %475 = vmatprep.subr.mxu0 0.0
    %476 = vmatpush1.msra.mxu0 0.0
    %477 = vmatprep.subr.mxu0 0.0
    %478 = vmatpush1.msra.mxu0 0.0
    %479 = vmatprep.subr.mxu0 0.0
    %480 = vmatpush1.msra.mxu0 0.0
    %481 = vmatprep.subr.mxu0 0.0
    %482 = vmatpush1.msra.mxu0 0.0
    %483 = vmatprep.subr.mxu0 0.0
    %484 = vmatpush1.msra.mxu0 0.0
    %485 = vmatprep.subr.mxu0 0.0
    %486 = vmatpush1.msra.mxu0 0.0
    %487 = vmatprep.subr.mxu0 0.0
    %488 = vmatpush1.msra.mxu0 0.0
    %489 = vmatprep.subr.mxu0 0.0
    %490 = vmatpush1.msra.mxu0 0.0
    %491 = vmatprep.subr.mxu0 0.0
    %492 = vmatpush1.msra.mxu0 0.0
    %493 = vmatprep.subr.mxu0 0.0
    %494 = vmatpush1.msra.mxu0 0.0
    %495 = vmatprep.subr.mxu0 0.0
    %496 = vmatpush1.msra.mxu0 0.0
    %497 = vmatprep.subr.mxu0 0.0
    %498 = vmatpush1.msra.mxu0 0.0
    %499 = vmatprep.subr.mxu0 0.0
    %500 = vmatpush1.msra.mxu0 0.0
    %501 = vmatprep.subr.mxu0 0.0
    %502 = vmatpush1.msra.mxu0 0.0
    %503 = vmatprep.subr.mxu0 0.0
    %504 = vmatpush1.msra.mxu0 0.0
    %505 = vmatprep.subr.mxu0 0.0
    %506 = vmatpush1.msra.mxu0 0.0
    %507 = vmatprep.subr.mxu0 0.0
    %508 = vmatpush1.msra.mxu0 0.0
    %509 = vmatprep.subr.mxu0 0.0
    %510 = vmatpush1.msra.mxu0 0.0
    %511 = vmatprep.mubr.f32.mxu0 0.0
    %512 = vmatmul.mubr.f32.gmra.mrb[0].mxu0 %v445
    %v513 = vpop.f32.mrb[0].mxu0
    %v514 = vadd.f32 %v441, %v513
    %v515 = vpop.f32.mrb[0].mxu0
    %516 = vdwg.mxu0
    %s517 = scalar_lea.vmem [#allocation2], 4
    %518 = vst.msk [vmem:[%s517] sm:$0xf] %vm418, %v514
    %s519 = scalar_lea.vmem %s3, 128
    %v520 = vld [vmem:[%s519] sm:$0xff]
    %v521 = vld [vmem:[%s519 + $0x8] sm:$0xff]
    %v522 = vld [vmem:[%s519 + $0x10] sm:$0xff]
    %v523 = vld [vmem:[%s519 + $0x18] sm:$0xff]
    %v524 = vmul.f32 %v520, %v148
    %v525 = vmul.f32 %v521, %v149
    %v526 = vmul.f32 %v522, %v150
    %v527 = vmul.f32 %v523, %v151
    %v528 = vadd.f32 %v25, %v524
    %v529 = vadd.f32 %v26, %v525
    %v530 = vadd.f32 %v27, %v526
    %v531 = vadd.f32 %v28, %v527
    %s532 = scalar_lea.vmem %s4, 4
    %v533 = vld [vmem:[%s532] sm:$0x1]
    %v534 = vmul.f32 %v533, %v169
    %v535 = vadd.f32 %v29, %v534
    %v537 = vlaneseq
    %v538 = vshrl.u32 %v537, 7
    %v539 = vsub.s32 0, %v538
    %v540 = vrot.slane %v535, %v539
    %542 = vrot.lane.b32.xlu0 %v321, 64
    %v543 = vpop.permute.xlu0 %542
    %v544 = vsel %vm207, %v543, 0
    %546 = vmatprep.subr.mxu0 0.0
    %547 = vmatpush1.msra.mxu0 %v528
    %548 = vmatprep.subr.mxu0 0.0
    %549 = vmatpush1.msra.mxu0 %v529
    %550 = vmatprep.subr.mxu0 0.0
    %551 = vmatpush1.msra.mxu0 %v530
    %552 = vmatprep.subr.mxu0 0.0
    %553 = vmatpush1.msra.mxu0 %v531
    %554 = vmatprep.subr.mxu0 0.0
    %555 = vmatpush1.msra.mxu0 0.0
    %556 = vmatprep.subr.mxu0 0.0
    %557 = vmatpush1.msra.mxu0 0.0
    %558 = vmatprep.subr.mxu0 0.0
    %559 = vmatpush1.msra.mxu0 0.0
    %560 = vmatprep.subr.mxu0 0.0
    %561 = vmatpush1.msra.mxu0 0.0
    %562 = vmatprep.subr.mxu0 0.0
    %563 = vmatpush1.msra.mxu0 0.0
    %564 = vmatprep.subr.mxu0 0.0
    %565 = vmatpush1.msra.mxu0 0.0
    %566 = vmatprep.subr.mxu0 0.0
    %567 = vmatpush1.msra.mxu0 0.0
    %568 = vmatprep.subr.mxu0 0.0
    %569 = vmatpush1.msra.mxu0 0.0
    %570 = vmatprep.subr.mxu0 0.0
    %571 = vmatpush1.msra.mxu0 0.0
    %572 = vmatprep.subr.mxu0 0.0
    %573 = vmatpush1.msra.mxu0 0.0
    %574 = vmatprep.subr.mxu0 0.0
    %575 = vmatpush1.msra.mxu0 0.0
    %576 = vmatprep.subr.mxu0 0.0
    %577 = vmatpush1.msra.mxu0 0.0
    %578 = vmatprep.subr.mxu0 0.0
    %579 = vmatpush1.msra.mxu0 0.0
    %580 = vmatprep.subr.mxu0 0.0
    %581 = vmatpush1.msra.mxu0 0.0
    %582 = vmatprep.subr.mxu0 0.0
    %583 = vmatpush1.msra.mxu0 0.0
    %584 = vmatprep.subr.mxu0 0.0
    %585 = vmatpush1.msra.mxu0 0.0
    %586 = vmatprep.subr.mxu0 0.0
    %587 = vmatpush1.msra.mxu0 0.0
    %588 = vmatprep.subr.mxu0 0.0
    %589 = vmatpush1.msra.mxu0 0.0
    %590 = vmatprep.subr.mxu0 0.0
    %591 = vmatpush1.msra.mxu0 0.0
    %592 = vmatprep.subr.mxu0 0.0
    %593 = vmatpush1.msra.mxu0 0.0
    %594 = vmatprep.subr.mxu0 0.0
    %595 = vmatpush1.msra.mxu0 0.0
    %596 = vmatprep.subr.mxu0 0.0
    %597 = vmatpush1.msra.mxu0 0.0
    %598 = vmatprep.subr.mxu0 0.0
    %599 = vmatpush1.msra.mxu0 0.0
    %600 = vmatprep.subr.mxu0 0.0
    %601 = vmatpush1.msra.mxu0 0.0
    %602 = vmatprep.subr.mxu0 0.0
    %603 = vmatpush1.msra.mxu0 0.0
    %604 = vmatprep.subr.mxu0 0.0
    %605 = vmatpush1.msra.mxu0 0.0
    %606 = vmatprep.subr.mxu0 0.0
    %607 = vmatpush1.msra.mxu0 0.0
    %608 = vmatprep.subr.mxu0 0.0
    %609 = vmatpush1.msra.mxu0 0.0
    %610 = vmatprep.mubr.f32.mxu0 0.0
    %611 = vmatmul.mubr.f32.gmra.mrb[0].mxu0 %v544
    %v612 = vpop.f32.mrb[0].mxu0
    %v613 = vadd.f32 %v540, %v612
    %v614 = vpop.f32.mrb[0].mxu0
    %615 = vdwg.mxu0
    %s616 = scalar_lea.vmem [#allocation2], 8
    %617 = vst.msk [vmem:[%s616] sm:$0xf] %vm418, %v613
    // Predicated region
    $region22: #{vi_ffg_forward.1} parent=1 // pred_check
      _
    $region23: #{vi_ffg_forward.1} parent=1 // pred_check_branch
      %619 = sbr.rel (0) target = $region25
    $region24: #{vi_ffg_forward.1} parent=1 // pred_region
      %s621 = ssub.s32 192, 192
      %622 = vsyncadd [#allocation3], %s621
      %s623 = sshll.u32 [#allocation2], 4
      %s624 = int_to_ptr.vmem [resolvable:$true] %s623
      %629 = dma.vmem_to_hbm [thread:$0]  %s624, 192, %s5, [#allocation3], 64, 64, 4
    $region25: #{vi_ffg_forward.1} parent=1 // pred_fallthru
      _
    // Predicated region
    $region26: #{vi_ffg_forward.1} parent=1 // pred_check
      _
    $region27: #{vi_ffg_forward.1} parent=1 // pred_check_branch
      %631 = sbr.rel (0) target = $region29
    $region28: #{vi_ffg_forward.1} parent=1 // pred_region
      %632 = dma.done [#allocation3], 192
    $region29: #{vi_ffg_forward.1} parent=1 // pred_fallthru
      _
    %633 = vsyncpa [#allocation3], 1

</llo_original>
